<compile_context>
chip_gen: v5e
topology: v5e:2x2
jax: 0.10.0
libtpu: 0.0.40
codegen_flags: <defaults>
</compile_context>

<pallas_src>
import math
import jax
import jax.numpy as jnp
from jax.experimental import pallas as pl
from jax.experimental.pallas import tpu as pltpu

LANE = 128  # TPU vreg lane width


# ----------------------------------------------------------------------------
# FerrersDiagram stand-in: number of standard Young tableaux via hook lengths.
# ----------------------------------------------------------------------------
def num_standard_tableaux(partition):
    n = sum(partition)
    ncols = partition[0]
    conj = [sum(1 for p in partition if p > c) for c in range(ncols)]
    hook_prod = 1
    for i, row_len in enumerate(partition):
        for j in range(row_len):
            arm = row_len - j - 1
            leg = conj[j] - i - 1
            hook_prod *= (arm + leg + 1)
    return math.factorial(n) // hook_prod


def _ceil_to(v, m):
    return ((v + m - 1) // m) * m


def _pad2d(a, rows, cols):
    return jnp.pad(a, ((0, rows - a.shape[0]), (0, cols - a.shape[1])))


# ----------------------------------------------------------------------------
# Pallas kernel: fused 3-layer MLP on one (batch_tile, n_in) tile.
# Weights/biases are whole-array blocks resident in VMEM across grid steps.
# ----------------------------------------------------------------------------
def _mlp_kernel(x_ref, w1_ref, b1_ref, w2_ref, b2_ref, w3_ref, b3_ref, o_ref):
    cd = w1_ref.dtype
    x = x_ref[...]                                                     # [bt, n_in]
    h1 = jnp.dot(x, w1_ref[...], preferred_element_type=jnp.float32)  # [bt, n_hid_p]
    h1 = jnp.maximum(h1 + b1_ref[...], 0.0)                           # bias+ReLU in f32
    h2 = jnp.dot(h1.astype(cd), w2_ref[...], preferred_element_type=jnp.float32)
    h2 = jnp.maximum(h2 + b2_ref[...], 0.0)
    out = jnp.dot(h2.astype(cd), w3_ref[...], preferred_element_type=jnp.float32)
    o_ref[...] = (out + b3_ref[...]).astype(o_ref.dtype)              # [bt, n_out]


# ----------------------------------------------------------------------------
# One-time parameter preparation (hoisted out of the per-call forward).
# Hidden dim is lane-padded to 128; n_in and n_out stay at their real sizes
# (blocks whose dims equal the full array dims are legal). Zero padding is
# mathematically inert through bias+ReLU.
# ----------------------------------------------------------------------------
def prepare_params(params, compute_dtype=jnp.float32):
    w1, b1, w2, b2, w3, b3 = (params[k] for k in ("w1", "b1", "w2", "b2", "w3", "b3"))
    n_in, n_hid = w1.shape
    n_out = w3.shape[1]
    n_hid_p = _ceil_to(n_hid, LANE)
    b1 = b1.reshape(1, -1)
    b2 = b2.reshape(1, -1)
    b3 = b3.reshape(1, -1)
    return {
        "w1": _pad2d(w1, n_in, n_hid_p).astype(compute_dtype),     # [n_in, 128]
        "b1": _pad2d(b1, 1, n_hid_p).astype(jnp.float32),          # [1, 128]
        "w2": _pad2d(w2, n_hid_p, n_hid_p).astype(compute_dtype),  # [128, 128]
        "b2": _pad2d(b2, 1, n_hid_p).astype(jnp.float32),          # [1, 128]
        "w3": _pad2d(w3, n_hid_p, n_out).astype(compute_dtype),    # [128, n_out]
        "b3": b3.astype(jnp.float32),                              # [1, n_out]
        "n_in": n_in, "n_hid": n_hid, "n_out": n_out,
    }


def irrep_dqn_mlp_forward(x, prep, *, batch_tile=2048, min_grid_steps=1):
    """x: [B, n_in] float32; prep: output of prepare_params(). Returns [B, n_out] f32.

    min_grid_steps=2 is recommended on v7x so the 'parallel' batch axis occupies
    both TensorCores; on v5e/v6e keep it at 1 (grid is a serial loop there).
    """
    w1, b1, w2, b2, w3, b3 = (prep[k] for k in ("w1", "b1", "w2", "b2", "w3", "b3"))
    n_in, n_hid, n_out = prep["n_in"], prep["n_hid"], prep["n_out"]
    B = x.shape[0]
    assert x.shape[1] == n_in

    cd = w1.dtype
    sub = 8 * (4 // jnp.dtype(cd).itemsize)  # sublane packing: f32 -> 8, bf16 -> 16

    # Size the tile so B_p/bt tiles evenly (minimal final-tile padding).
    num_tiles = max(min_grid_steps, pl.cdiv(B, batch_tile))
    bt = _ceil_to(pl.cdiv(B, num_tiles), sub)
    B_p = bt * num_tiles

    xc = x if x.dtype == cd else x.astype(cd)
    xp = xc if B_p == B else jnp.pad(xc, ((0, B_p - B), (0, 0)))   # row pad only

    # Constant index_map -> resident in VMEM across all grid steps.
    resident = lambda a: pl.BlockSpec(a.shape, lambda i: (0, 0))

    # Cost estimate from real (unpadded) dims / actual HBM bytes moved.
    flops = 2 * B * (n_in * n_hid + n_hid * n_hid + n_hid * n_out)
    bytes_accessed = (
        xp.size * xp.dtype.itemsize
        + B_p * n_out * 4
        + sum(a.size * a.dtype.itemsize for a in (w1, b1, w2, b2, w3, b3))
    )

    out = pl.pallas_call(
        _mlp_kernel,
        out_shape=jax.ShapeDtypeStruct((B_p, n_out), jnp.float32),
        grid=(num_tiles,),
        in_specs=[
            pl.BlockSpec((bt, n_in), lambda i: (i, 0)),   # x: tiled over batch, no lane pad
            resident(w1), resident(b1),
            resident(w2), resident(b2),
            resident(w3), resident(b3),
        ],
        out_specs=pl.BlockSpec((bt, n_out), lambda i: (i, 0)),  # real n_out width
        compiler_params=pltpu.CompilerParams(dimension_semantics=("parallel",)),
        cost_estimate=pl.CostEstimate(
            flops=flops, transcendentals=0, bytes_accessed=bytes_accessed),
    )(xp, w1, b1, w2, b2, w3, b3)

    return out if B_p == B else out[:B]


# ----------------------------------------------------------------------------
# Deterministic parameter init (mimics nn.Linear default uniform(-k, k), k=1/sqrt(fan_in)),
# weights stored as [in, out] (transposed vs torch's [out, in]).
# ----------------------------------------------------------------------------
def init_params(key, n_in, n_hid, n_out):
    def linear(key, fan_in, fan_out):
        kw, kb = jax.random.split(key)
        bound = 1.0 / math.sqrt(fan_in)
        w = jax.random.uniform(kw, (fan_in, fan_out), jnp.float32, -bound, bound)
        b = jax.random.uniform(kb, (1, fan_out), jnp.float32, -bound, bound)
        return w, b

    k1, k2, k3 = jax.random.split(key, 3)
    w1, b1 = linear(k1, n_in, n_hid)
    w2, b2 = linear(k2, n_hid, n_hid)
    w3, b3 = linear(k3, n_hid, n_out)
    return {"w1": w1, "b1": b1, "w2": w2, "b2": b2, "w3": w3, "b3": b3}


# Pure-JAX f32 reference (PyTorch-equivalent math).
def _ref_forward(x, p):
    h1 = jnp.maximum(jnp.dot(x, p["w1"]) + p["b1"], 0.0)
    h2 = jnp.maximum(jnp.dot(h1, p["w2"]) + p["b2"], 0.0)
    return jnp.dot(h2, p["w3"]) + p["b3"]


if __name__ == "__main__":
    partition = (3, 1)                       # 3 standard tableaux
    n_tab = num_standard_tableaux(partition)
    n_in = n_tab * n_tab                     # 9  (flattened irrep matrix)
    n_hid = 32
    n_out = 4                                # e.g. number of tile moves
    batch = 2

    key = jax.random.PRNGKey(0)
    kx, kp, kx2 = jax.random.split(key, 3)
    x = jax.random.normal(kx, (batch, n_in), jnp.float32)
    params = init_params(kp, n_in, n_hid, n_out)
    prep = prepare_params(params)            # one-time pad/cast of weights & biases

    out = jax.block_until_ready(irrep_dqn_mlp_forward(x, prep))
    assert out.shape == (batch, n_out)
    ref = _ref_forward(x, params)
    assert jnp.allclose(out, ref, atol=2e-2, rtol=2e-2)

    # Larger batch exercising batch tiling + row padding (300 -> 3 tiles of 104).
    big_batch = 300
    xb = jax.random.normal(kx2, (big_batch, n_in), jnp.float32)
    out_b = jax.block_until_ready(irrep_dqn_mlp_forward(xb, prep, batch_tile=128))
    assert out_b.shape == (big_batch, n_out)
    ref_b = _ref_forward(xb, params)
    assert jnp.allclose(out_b, ref_b, atol=2e-2, rtol=2e-2)

    # v7x-style invocation: force >=2 parallel grid steps (both TensorCores).
    out_c = jax.block_until_ready(irrep_dqn_mlp_forward(xb, prep, min_grid_steps=2))
    assert out_c.shape == (big_batch, n_out)
    assert jnp.allclose(out_c, ref_b, atol=2e-2, rtol=2e-2)

    # TODO(synk): get_action / forward_grid are env-driven NumPy glue (neighbor
    # enumeration, argmax with invalid-move masking) with no tensor compute to port.
    print("KERNEL_OK")
</pallas_src>

<mosaic_0001>
module attributes {stable_mosaic.version = 11 : i64} {
  func.func @_mlp_kernel(%arg0: i32, %arg1: memref<8x9xf32, #tpu.memory_space<vmem>>, %arg2: memref<9x128xf32, #tpu.memory_space<vmem>>, %arg3: memref<1x128xf32, #tpu.memory_space<vmem>>, %arg4: memref<128x128xf32, #tpu.memory_space<vmem>>, %arg5: memref<1x128xf32, #tpu.memory_space<vmem>>, %arg6: memref<128x4xf32, #tpu.memory_space<vmem>>, %arg7: memref<1x4xf32, #tpu.memory_space<vmem>>, %arg8: memref<8x4xf32, #tpu.memory_space<vmem>>) attributes {dimension_semantics = [#tpu.dimension_semantics<parallel>], iteration_bounds = array<i64: 1>, scalar_prefetch = 0 : i64, scratch_operands = 0 : i64, tpu.core_type = #tpu.core_type<tc>, window_params = [{transform_indices = @transform_0, window_bounds = array<i64: 8, 9>}, {pipeline_mode = #tpu.pipeline_mode<synchronous>, transform_indices = @transform_1, window_bounds = array<i64: 9, 128>}, {pipeline_mode = #tpu.pipeline_mode<synchronous>, transform_indices = @transform_2, window_bounds = array<i64: 1, 128>}, {pipeline_mode = #tpu.pipeline_mode<synchronous>, transform_indices = @transform_3, window_bounds = array<i64: 128, 128>}, {pipeline_mode = #tpu.pipeline_mode<synchronous>, transform_indices = @transform_4, window_bounds = array<i64: 1, 128>}, {pipeline_mode = #tpu.pipeline_mode<synchronous>, transform_indices = @transform_5, window_bounds = array<i64: 128, 4>}, {pipeline_mode = #tpu.pipeline_mode<synchronous>, transform_indices = @transform_6, window_bounds = array<i64: 1, 4>}, {transform_indices = @transform_7, window_bounds = array<i64: 8, 4>}]} {
    %c0 = arith.constant 0 : index
    %c0_0 = arith.constant 0 : index
    %0 = vector.load %arg1[%c0, %c0_0] : memref<8x9xf32, #tpu.memory_space<vmem>>, vector<8x9xf32>
    %c0_1 = arith.constant 0 : index
    %c0_2 = arith.constant 0 : index
    %1 = vector.load %arg2[%c0_1, %c0_2] : memref<9x128xf32, #tpu.memory_space<vmem>>, vector<9x128xf32>
    %cst = arith.constant dense<0.000000e+00> : vector<8x128xf32>
    %2 = tpu.matmul %0, %1, %cst {dimension_numbers = #tpu.dot_dimension_numbers<[1], [0], [0], [1], [0, 0, 1, 1], [], []>} : vector<8x9xf32>, vector<9x128xf32>, vector<8x128xf32> -> vector<8x128xf32>
    %c0_3 = arith.constant 0 : index
    %c0_4 = arith.constant 0 : index
    %3 = vector.load %arg3[%c0_3, %c0_4] : memref<1x128xf32, #tpu.memory_space<vmem>>, vector<1x128xf32>
    %4 = vector.broadcast %3 : vector<1x128xf32> to vector<8x128xf32>
    %5 = arith.addf %2, %4 : vector<8x128xf32>
    %cst_5 = arith.constant 0.000000e+00 : f32
    %6 = vector.broadcast %cst_5 : f32 to vector<8x128xf32>
    %7 = arith.maximumf %5, %6 : vector<8x128xf32>
    %c0_6 = arith.constant 0 : index
    %c0_7 = arith.constant 0 : index
    %8 = vector.load %arg4[%c0_6, %c0_7] : memref<128x128xf32, #tpu.memory_space<vmem>>, vector<128x128xf32>
    %cst_8 = arith.constant dense<0.000000e+00> : vector<8x128xf32>
    %9 = tpu.matmul %7, %8, %cst_8 {dimension_numbers = #tpu.dot_dimension_numbers<[1], [0], [0], [1], [0, 0, 1, 1], [], []>} : vector<8x128xf32>, vector<128x128xf32>, vector<8x128xf32> -> vector<8x128xf32>
    %c0_9 = arith.constant 0 : index
    %c0_10 = arith.constant 0 : index
    %10 = vector.load %arg5[%c0_9, %c0_10] : memref<1x128xf32, #tpu.memory_space<vmem>>, vector<1x128xf32>
    %11 = vector.broadcast %10 : vector<1x128xf32> to vector<8x128xf32>
    %12 = arith.addf %9, %11 : vector<8x128xf32>
    %cst_11 = arith.constant 0.000000e+00 : f32
    %13 = vector.broadcast %cst_11 : f32 to vector<8x128xf32>
    %14 = arith.maximumf %12, %13 : vector<8x128xf32>
    %c0_12 = arith.constant 0 : index
    %c0_13 = arith.constant 0 : index
    %15 = vector.load %arg6[%c0_12, %c0_13] : memref<128x4xf32, #tpu.memory_space<vmem>>, vector<128x4xf32>
    %cst_14 = arith.constant dense<0.000000e+00> : vector<8x4xf32>
    %16 = tpu.matmul %14, %15, %cst_14 {dimension_numbers = #tpu.dot_dimension_numbers<[1], [0], [0], [1], [0, 0, 1, 1], [], []>} : vector<8x128xf32>, vector<128x4xf32>, vector<8x4xf32> -> vector<8x4xf32>
    %c0_15 = arith.constant 0 : index
    %c0_16 = arith.constant 0 : index
    %17 = vector.load %arg7[%c0_15, %c0_16] : memref<1x4xf32, #tpu.memory_space<vmem>>, vector<1x4xf32>
    %18 = vector.broadcast %17 : vector<1x4xf32> to vector<8x4xf32>
    %19 = arith.addf %16, %18 : vector<8x4xf32>
    %c0_17 = arith.constant 0 : index
    %c0_18 = arith.constant 0 : index
    %20 = vector.load %arg8[%c0_17, %c0_18] : memref<8x4xf32, #tpu.memory_space<vmem>>, vector<8x4xf32>
    tpu.vector_store %arg8[%c0_17, %c0_18], %19 {strides = array<i32>} : memref<8x4xf32, #tpu.memory_space<vmem>>, vector<8x4xf32>,
    return
  }
  func.func @transform_0(%arg0: i32) -> (i32, i32) {
    %c0_i32 = arith.constant 0 : i32
    %c0_i32_0 = arith.constant 0 : i32
    return %arg0, %c0_i32 : i32, i32
  }
  func.func @transform_1(%arg0: i32) -> (i32, i32) {
    %c0_i32 = arith.constant 0 : i32
    %c0_i32_0 = arith.constant 0 : i32
    %c0_i32_1 = arith.constant 0 : i32
    return %c0_i32, %c0_i32_0 : i32, i32
  }
  func.func @transform_2(%arg0: i32) -> (i32, i32) {
    %c0_i32 = arith.constant 0 : i32
    %c0_i32_0 = arith.constant 0 : i32
    %c0_i32_1 = arith.constant 0 : i32
    return %c0_i32, %c0_i32_0 : i32, i32
  }
  func.func @transform_3(%arg0: i32) -> (i32, i32) {
    %c0_i32 = arith.constant 0 : i32
    %c0_i32_0 = arith.constant 0 : i32
    %c0_i32_1 = arith.constant 0 : i32
    return %c0_i32, %c0_i32_0 : i32, i32
  }
  func.func @transform_4(%arg0: i32) -> (i32, i32) {
    %c0_i32 = arith.constant 0 : i32
    %c0_i32_0 = arith.constant 0 : i32
    %c0_i32_1 = arith.constant 0 : i32
    return %c0_i32, %c0_i32_0 : i32, i32
  }
  func.func @transform_5(%arg0: i32) -> (i32, i32) {
    %c0_i32 = arith.constant 0 : i32
    %c0_i32_0 = arith.constant 0 : i32
    %c0_i32_1 = arith.constant 0 : i32
    return %c0_i32, %c0_i32_0 : i32, i32
  }
  func.func @transform_6(%arg0: i32) -> (i32, i32) {
    %c0_i32 = arith.constant 0 : i32
    %c0_i32_0 = arith.constant 0 : i32
    %c0_i32_1 = arith.constant 0 : i32
    return %c0_i32, %c0_i32_0 : i32, i32
  }
  func.func @transform_7(%arg0: i32) -> (i32, i32) {
    %c0_i32 = arith.constant 0 : i32
    %c0_i32_0 = arith.constant 0 : i32
    return %arg0, %c0_i32 : i32, i32
  }
}

</mosaic_0001>

<llo_original>
// kernel: tpu_custom_call.1
$region0: #{tpu_custom_call.1}
  #allocation0 [shape = 'u32[]', space=smem, size = 0x4, offset = 0x4, fixed_abs, tag = 'smem constant byte address 0x4 - core index']
  #allocation1 [shape = 'u32[72,128]{1,0:T(1,128)}', space=vmem, size = 0x9000, scoped, tag = 'internal scratch']
  %s0 = inlined_call_operand.hbm [shape: f32[8,9], index: 0, kind: input, shape index: {}]
  %s1 = inlined_call_operand.hbm [shape: f32[9,128], index: 1, kind: input, shape index: {}]
  %s2 = inlined_call_operand.vmem [shape: f32[1,128], index: 2, kind: input, shape index: {}]
  %s3 = inlined_call_operand.vmem [shape: f32[128,128], index: 3, kind: input, shape index: {}]
  %s4 = inlined_call_operand.vmem [shape: f32[1,128], index: 4, kind: input, shape index: {}]
  %s5 = inlined_call_operand.vmem [shape: f32[128,4], index: 5, kind: input, shape index: {}]
  %s6 = inlined_call_operand.vmem [shape: f32[1,4], index: 6, kind: input, shape index: {}]
  %s7 = inlined_call_operand.vmem [shape: f32[8,4], index: 7, kind: output, shape index: {}]
  %s8 = sld [smem:[#allocation0]]
  $region46: #{tpu_custom_call.1} parent=0
    _
  %s10 = ssub.s32 1, %s8
  %s11 = scalar_select 0, %s10, %s8
  $region1: #{tpu_custom_call.1} parent=0
    #allocation2 [shape = 'u8[4096]{0}', space=vmem, size = 0x1000, scoped, tag = 'input window, operand 0, single buffered']
    #allocation3 [shape = 's32[1]{0}', space=sflag, size = 0x4, scoped, tag = 'scoped memory for tpu_custom_call.1']
    #allocation4 [shape = 'u8[8192]{0}', space=vmem, size = 0x2000, scoped, tag = 'input window, operand 1, single buffered']
    #allocation5 [shape = 's32[1]{0}', space=sflag, size = 0x4, scoped, tag = 'scoped memory for tpu_custom_call.1']
    %12 = vsyncpa [#allocation3], 0
    %13 = vsyncpa [#allocation5], 0
    // Predicated region
    $region2: #{tpu_custom_call.1} parent=1 // pred_check
      _
    $region3: #{tpu_custom_call.1} parent=1 // pred_check_branch
      %15 = sbr.rel (0) target = $region5
    $region4: #{tpu_custom_call.1} parent=1 // pred_region
      %17 = vsyncadd [#allocation3], 0
      %s19 = sshll.u32 %s0, 4
      %s20 = int_to_ptr.hbm [resolvable:$true] %s19
      %s21 = sshll.u32 [#allocation2], 4
      %s22 = int_to_ptr.vmem [resolvable:$true] %s21
      %24 = dma.hbm_to_vmem [thread:$0]  %s20, 128, %s22, [#allocation3]
    $region5: #{tpu_custom_call.1} parent=1 // pred_fallthru
      _
    // Predicated region
    $region6: #{tpu_custom_call.1} parent=1 // pred_check
      _
    $region7: #{tpu_custom_call.1} parent=1 // pred_check_branch
      %26 = sbr.rel (0) target = $region9
    $region8: #{tpu_custom_call.1} parent=1 // pred_region
      %28 = vsyncadd [#allocation5], 0
      %s29 = sshll.u32 %s1, 4
      %s30 = int_to_ptr.hbm [resolvable:$true] %s29
      %s31 = sshll.u32 [#allocation4], 4
      %s32 = int_to_ptr.vmem [resolvable:$true] %s31
      %37 = dma.hbm_to_vmem [thread:$0]  %s30, 256, %s32, [#allocation5], 128, 128, 8
    $region9: #{tpu_custom_call.1} parent=1 // pred_fallthru
      _
    // Predicated region
    $region10: #{tpu_custom_call.1} parent=1 // pred_check
      _
    $region11: #{tpu_custom_call.1} parent=1 // pred_check_branch
      %39 = sbr.rel (0) target = $region13
    $region12: #{tpu_custom_call.1} parent=1 // pred_region
      _
    $region13: #{tpu_custom_call.1} parent=1 // pred_fallthru
      _
    // Predicated region
    $region14: #{tpu_custom_call.1} parent=1 // pred_check
      _
    $region15: #{tpu_custom_call.1} parent=1 // pred_check_branch
      %41 = sbr.rel (0) target = $region17
    $region16: #{tpu_custom_call.1} parent=1 // pred_region
      _
    $region17: #{tpu_custom_call.1} parent=1 // pred_fallthru
      _
    // Predicated region
    $region18: #{tpu_custom_call.1} parent=1 // pred_check
      _
    $region19: #{tpu_custom_call.1} parent=1 // pred_check_branch
      %43 = sbr.rel (0) target = $region21
    $region20: #{tpu_custom_call.1} parent=1 // pred_region
      _
    $region21: #{tpu_custom_call.1} parent=1 // pred_fallthru
      _
    // Predicated region
    $region22: #{tpu_custom_call.1} parent=1 // pred_check
      _
    $region23: #{tpu_custom_call.1} parent=1 // pred_check_branch
      %45 = sbr.rel (0) target = $region25
    $region24: #{tpu_custom_call.1} parent=1 // pred_region
      _
    $region25: #{tpu_custom_call.1} parent=1 // pred_fallthru
      _
    // Predicated region
    $region26: #{tpu_custom_call.1} parent=1 // pred_check
      _
    $region27: #{tpu_custom_call.1} parent=1 // pred_check_branch
      %47 = sbr.rel (0) target = $region29
    $region28: #{tpu_custom_call.1} parent=1 // pred_region
      _
    $region29: #{tpu_custom_call.1} parent=1 // pred_fallthru
      _
    // Predicated region
    $region30: #{tpu_custom_call.1} parent=1 // pred_check
      _
    $region31: #{tpu_custom_call.1} parent=1 // pred_check_branch
      %49 = sbr.rel (0) target = $region33
    $region32: #{tpu_custom_call.1} parent=1 // pred_region
      %51 = dma.done [#allocation3], 128
    $region33: #{tpu_custom_call.1} parent=1 // pred_fallthru
      _
    // Predicated region
    $region34: #{tpu_custom_call.1} parent=1 // pred_check
      _
    $region35: #{tpu_custom_call.1} parent=1 // pred_check_branch
      %53 = sbr.rel (0) target = $region37
    $region36: #{tpu_custom_call.1} parent=1 // pred_region
      %55 = dma.done [#allocation5], 256
    $region37: #{tpu_custom_call.1} parent=1 // pred_fallthru
      _
    %v56 = vld [vmem:[#allocation2] sm:$0xff]
    %v57 = vld [vmem:[#allocation4] sm:$0xff]
    %v58 = vld [vmem:[#allocation4 + $0x8] sm:$0x1]
    %v59 = vld [vmem:[%s2] sm:$0x1]
    %v61 = vperm.slane %v59, 0
    %vm63 = vcmask 72704
    %v65 = vsel %vm63, %v56, 0
    %vm67 = vcmask 1040384
    %v69 = vsel %vm67, %v58, 0
    %71 = vmatpush.msra.mxu0 0.0
    %72 = vmatpush.msra.mxu0 0.0
    %73 = vmatpush.msra.mxu0 0.0
    %74 = vmatpush.msra.mxu0 0.0
    %75 = vmatpush.msra.mxu0 0.0
    %76 = vmatpush.msra.mxu0 0.0
    %77 = vmatpush.msra.mxu0 0.0
    %78 = vmatpush.msra.mxu0 0.0
    %79 = vmatpush.msra.mxu0 0.0
    %80 = vmatpush.msra.mxu0 0.0
    %81 = vmatpush.msra.mxu0 0.0
    %82 = vmatpush.msra.mxu0 0.0
    %83 = vmatpush.msra.mxu0 0.0
    %84 = vmatpush.msra.mxu0 0.0
    %85 = vmatpush.msra.mxu0 %v69
    %86 = vmatpush.msra.mxu0 %v57
    %87 = vmatmul.f32.gmra.mxu0 %v65
    %v88 = vpop.f32.mrf.mxu0
    %v89 = vadd.f32 %v61, %v88
    %90 = vdwg.mxu0
    %v91 = vmax.f32 %v89, 0.0
    %v92 = vld [vmem:[%s3] sm:$0xff]
    %v93 = vld [vmem:[%s3 + $0x8] sm:$0xff]
    %v94 = vld [vmem:[%s3 + $0x10] sm:$0xff]
    %v95 = vld [vmem:[%s3 + $0x18] sm:$0xff]
    %v96 = vld [vmem:[%s3 + $0x20] sm:$0xff]
    %v97 = vld [vmem:[%s3 + $0x28] sm:$0xff]
    %v98 = vld [vmem:[%s3 + $0x30] sm:$0xff]
    %v99 = vld [vmem:[%s3 + $0x38] sm:$0xff]
    %v100 = vld [vmem:[%s3 + $0x40] sm:$0xff]
    %v101 = vld [vmem:[%s3 + $0x48] sm:$0xff]
    %v102 = vld [vmem:[%s3 + $0x50] sm:$0xff]
    %v103 = vld [vmem:[%s3 + $0x58] sm:$0xff]
    %v104 = vld [vmem:[%s3 + $0x60] sm:$0xff]
    %v105 = vld [vmem:[%s3 + $0x68] sm:$0xff]
    %v106 = vld [vmem:[%s3 + $0x70] sm:$0xff]
    %v107 = vld [vmem:[%s3 + $0x78] sm:$0xff]
    %v108 = vld [vmem:[%s4] sm:$0x1]
    %v110 = vperm.slane %v108, 0
    %112 = vmatpush.msra.mxu0 %v107
    %113 = vmatpush.msra.mxu0 %v106
    %114 = vmatpush.msra.mxu0 %v105
    %115 = vmatpush.msra.mxu0 %v104
    %116 = vmatpush.msra.mxu0 %v103
    %117 = vmatpush.msra.mxu0 %v102
    %118 = vmatpush.msra.mxu0 %v101
    %119 = vmatpush.msra.mxu0 %v100
    %120 = vmatpush.msra.mxu0 %v99
    %121 = vmatpush.msra.mxu0 %v98
    %122 = vmatpush.msra.mxu0 %v97
    %123 = vmatpush.msra.mxu0 %v96
    %124 = vmatpush.msra.mxu0 %v95
    %125 = vmatpush.msra.mxu0 %v94
    %126 = vmatpush.msra.mxu0 %v93
    %127 = vmatpush.msra.mxu0 %v92
    %128 = vmatmul.f32.gmra.mxu0 %v91
    %v129 = vpop.f32.mrf.mxu0
    %v130 = vadd.f32 %v110, %v129
    %131 = vdwg.mxu0
    %v132 = vmax.f32 %v130, 0.0
    %v133 = vld [vmem:[%s5] sm:$0xff]
    %v134 = vld [vmem:[%s5 + $0x8] sm:$0xff]
    %v135 = vld [vmem:[%s5 + $0x10] sm:$0xff]
    %v136 = vld [vmem:[%s5 + $0x18] sm:$0xff]
    %v137 = vld [vmem:[%s5 + $0x20] sm:$0xff]
    %v138 = vld [vmem:[%s5 + $0x28] sm:$0xff]
    %v139 = vld [vmem:[%s5 + $0x30] sm:$0xff]
    %v140 = vld [vmem:[%s5 + $0x38] sm:$0xff]
    %v141 = vld [vmem:[%s5 + $0x40] sm:$0xff]
    %v142 = vld [vmem:[%s5 + $0x48] sm:$0xff]
    %v143 = vld [vmem:[%s5 + $0x50] sm:$0xff]
    %v144 = vld [vmem:[%s5 + $0x58] sm:$0xff]
    %v145 = vld [vmem:[%s5 + $0x60] sm:$0xff]
    %v146 = vld [vmem:[%s5 + $0x68] sm:$0xff]
    %v147 = vld [vmem:[%s5 + $0x70] sm:$0xff]
    %v148 = vld [vmem:[%s5 + $0x78] sm:$0xff]
    %v149 = vld [vmem:[%s6] sm:$0x1]
    %v151 = vperm.slane %v149, 0
    %153 = vmatpush.msra.mxu0 %v148
    %154 = vmatpush.msra.mxu0 %v147
    %155 = vmatpush.msra.mxu0 %v146
    %156 = vmatpush.msra.mxu0 %v145
    %157 = vmatpush.msra.mxu0 %v144
    %158 = vmatpush.msra.mxu0 %v143
    %159 = vmatpush.msra.mxu0 %v142
    %160 = vmatpush.msra.mxu0 %v141
    %161 = vmatpush.msra.mxu0 %v140
    %162 = vmatpush.msra.mxu0 %v139
    %163 = vmatpush.msra.mxu0 %v138
    %164 = vmatpush.msra.mxu0 %v137
    %165 = vmatpush.msra.mxu0 %v136
    %166 = vmatpush.msra.mxu0 %v135
    %167 = vmatpush.msra.mxu0 %v134
    %168 = vmatpush.msra.mxu0 %v133
    %169 = vmatmul.f32.gmra.mxu0 %v132
    %v170 = vpop.f32.mrf.mxu0
    %v171 = vadd.f32 %v151, %v170
    %172 = vdwg.mxu0
    %vm173 = vcmask 31744
    %174 = vst.msk [vmem:[%s7] sm:$0xff] %vm173, %v171
    // Predicated region
    $region38: #{tpu_custom_call.1} parent=1 // pred_check
      _
    $region39: #{tpu_custom_call.1} parent=1 // pred_check_branch
      %176 = sbr.rel (0) target = $region41
    $region40: #{tpu_custom_call.1} parent=1 // pred_region
      _
    $region41: #{tpu_custom_call.1} parent=1 // pred_fallthru
      _
    // Predicated region
    $region42: #{tpu_custom_call.1} parent=1 // pred_check
      _
    $region43: #{tpu_custom_call.1} parent=1 // pred_check_branch
      %178 = sbr.rel (0) target = $region45
    $region44: #{tpu_custom_call.1} parent=1 // pred_region
      _
    $region45: #{tpu_custom_call.1} parent=1 // pred_fallthru
      _
    %179 = vsyncpa [#allocation3], 1
    %180 = vsyncpa [#allocation5], 1

</llo_original>
